<compile_context>
chip_gen: v5e
topology: v5e:2x2
jax: 0.10.0
libtpu: 0.0.40
codegen_flags: <defaults>
</compile_context>

<pallas_src>
import functools

import jax
import jax.numpy as jnp
from jax.experimental import pallas as pl
from jax.experimental.pallas import tpu as pltpu

_LANE = 128
_SUBLANE = 8


def _l1_partial_sum_kernel(a_ref, b_ref, out_ref, *, tile_rows, rows_valid,
                           needs_mask):
    i = pl.program_id(1)  # reduction axis ("arbitrary", last)

    # Zero this core's resident accumulator block on its first reduction step.
    @pl.when(i == 0)
    def _():
        out_ref[...] = jnp.zeros_like(out_ref)

    # Load in native dtype, cast to f32 in-register (no wrapper-side astype).
    a = a_ref[...].astype(jnp.float32)
    b = b_ref[...].astype(jnp.float32)
    diff = jnp.abs(a - b)

    if needs_mask:
        # Mask rows that fall outside the true data (partial last block and/or
        # clamped duplicate steps of the core split). Pure VPU work.
        c = pl.program_id(0)
        row0 = (c * pl.num_programs(1) + i) * tile_rows
        row_ids = row0 + jax.lax.broadcasted_iota(
            jnp.int32, (tile_rows, _LANE), 0)
        diff = jnp.where(row_ids < rows_valid, diff, 0.0)

    if tile_rows % _SUBLANE == 0:
        # Fold (tile_rows, 128) onto the (8, 128) vreg-shaped accumulator using
        # pure elementwise VPU adds; cross-lane reduce deferred to the wrapper.
        out_ref[...] += jnp.sum(
            diff.reshape(tile_rows // _SUBLANE, _SUBLANE, _LANE), axis=0)
    else:
        # Rare tiny single-block case (rows < 8 not a sublane multiple):
        # scalar fold is fine.
        out_ref[0, 0] += jnp.sum(diff)


def l1_loss_pallas(warped_image, target_image, *, tile_rows=2048,
                   core_splits=2):
    """Mean absolute error between two tensors of identical shape (any rank)."""
    assert warped_image.shape == target_image.shape
    n = warped_image.size
    assert n > 0

    a = warped_image.reshape(-1)
    b = target_image.reshape(-1)

    # Only pad the (tiny) lane tail when n is not a multiple of 128; padded
    # zeros contribute 0 to the L1 sum and the mean divides by the true n.
    rem = n % _LANE
    if rem:
        pad = _LANE - rem
        a = jnp.pad(a, (0, pad))
        b = jnp.pad(b, (0, pad))

    rows = a.shape[0] // _LANE
    a2 = a.reshape(rows, _LANE)
    b2 = b.reshape(rows, _LANE)

    if rows <= tile_rows:
        tr = rows          # single full-extent block (always a legal block shape)
    else:
        tr = tile_rows     # multiple of 8 -> (8,128)-tileable

    total_blocks = pl.cdiv(rows, tr)
    ncores = min(core_splits, total_blocks)   # row-range split across TCs (v7x)
    bpc = pl.cdiv(total_blocks, ncores)       # reduction steps per core
    needs_mask = (ncores * bpc * tr) != rows

    def in_index_map(c, i):
        # Clamp so duplicated / tail steps stay in bounds; the kernel masks
        # their contribution to zero.
        return (jnp.minimum(c * bpc + i, total_blocks - 1), 0)

    kernel = functools.partial(
        _l1_partial_sum_kernel,
        tile_rows=tr, rows_valid=rows, needs_mask=needs_mask)

    partials = pl.pallas_call(
        kernel,
        out_shape=jax.ShapeDtypeStruct((ncores * _SUBLANE, _LANE), jnp.float32),
        grid_spec=pltpu.PrefetchScalarGridSpec(
            num_scalar_prefetch=0,
            grid=(ncores, bpc),
            in_specs=[
                pl.BlockSpec((tr, _LANE), in_index_map),
                pl.BlockSpec((tr, _LANE), in_index_map),
            ],
            out_specs=pl.BlockSpec((_SUBLANE, _LANE), lambda c, i: (c, 0)),
        ),
        compiler_params=pltpu.CompilerParams(
            dimension_semantics=("parallel", "arbitrary"),
        ),
    )(a2, b2)

    # Single small cross-lane reduction + mean normalization (true n).
    return jnp.sum(partials) / n


if __name__ == "__main__":
    key = jax.random.PRNGKey(0)
    k1, k2, k3, k4, k5, k6 = jax.random.split(key, 6)

    # Main case: NCHW image pair (2, 4, 16, 16) — single large-block path.
    warped = jax.random.normal(k1, (2, 4, 16, 16), dtype=jnp.float32)
    target = jax.random.normal(k2, (2, 4, 16, 16), dtype=jnp.float32)
    loss = jax.block_until_ready(l1_loss_pallas(warped, target))
    ref = jnp.mean(jnp.abs(warped - target))
    assert jnp.allclose(loss, ref, rtol=1e-5, atol=1e-6), (loss, ref)

    # Multi-block path: forces grid > 1, 2-way core split, masked/clamped tail.
    w2 = jax.random.normal(k3, (2, 3, 64, 63), dtype=jnp.float32)
    t2 = jax.random.normal(k4, (2, 3, 64, 63), dtype=jnp.float32)
    loss2 = jax.block_until_ready(l1_loss_pallas(w2, t2, tile_rows=64))
    ref2 = jnp.mean(jnp.abs(w2 - t2))
    assert jnp.allclose(loss2, ref2, rtol=1e-5, atol=1e-6), (loss2, ref2)

    # Ragged element count (n % 128 != 0) + sub-sublane single block.
    w3 = jax.random.normal(k5, (2, 3, 5, 7), dtype=jnp.float32)
    t3 = jax.random.normal(k6, (2, 3, 5, 7), dtype=jnp.float32)
    loss3 = jax.block_until_ready(l1_loss_pallas(w3, t3))
    ref3 = jnp.mean(jnp.abs(w3 - t3))
    assert jnp.allclose(loss3, ref3, rtol=1e-5, atol=1e-6), (loss3, ref3)

    print("KERNEL_OK")
</pallas_src>

<mosaic_0001>
module attributes {stable_mosaic.version = 11 : i64} {
  func.func @_l1_partial_sum_kernel(%arg0: i32, %arg1: i32, %arg2: memref<16x128xf32, #tpu.memory_space<vmem>>, %arg3: memref<16x128xf32, #tpu.memory_space<vmem>>, %arg4: memref<8x128xf32, #tpu.memory_space<vmem>>) attributes {dimension_semantics = [#tpu.dimension_semantics<parallel>, #tpu.dimension_semantics<arbitrary>], iteration_bounds = array<i64: 1, 1>, scalar_prefetch = 0 : i64, scratch_operands = 0 : i64, tpu.core_type = #tpu.core_type<tc>, window_params = [{transform_indices = @transform_0, window_bounds = array<i64: 16, 128>}, {transform_indices = @transform_1, window_bounds = array<i64: 16, 128>}, {transform_indices = @transform_2, window_bounds = array<i64: 8, 128>}]} {
    %c0_i32 = arith.constant 0 : i32
    %0 = arith.cmpi eq, %arg1, %c0_i32 : i32
    %1 = arith.extui %0 : i1 to i32
    %c0_i32_0 = arith.constant 0 : i32
    %2 = arith.cmpi ne, %1, %c0_i32_0 : i32
    scf.if %2 {
      %cst_8 = arith.constant 0.000000e+00 : f32
      %12 = vector.broadcast %cst_8 : f32 to vector<8x128xf32>
      %c0_9 = arith.constant 0 : index
      %c0_10 = arith.constant 0 : index
      %13 = vector.load %arg4[%c0_9, %c0_10] : memref<8x128xf32, #tpu.memory_space<vmem>>, vector<8x128xf32>
      tpu.vector_store %arg4[%c0_9, %c0_10], %12 {strides = array<i32>} : memref<8x128xf32, #tpu.memory_space<vmem>>, vector<8x128xf32>,
    } else {
    }
    %c0 = arith.constant 0 : index
    %c0_1 = arith.constant 0 : index
    %3 = vector.load %arg2[%c0, %c0_1] : memref<16x128xf32, #tpu.memory_space<vmem>>, vector<16x128xf32>
    %c0_2 = arith.constant 0 : index
    %c0_3 = arith.constant 0 : index
    %4 = vector.load %arg3[%c0_2, %c0_3] : memref<16x128xf32, #tpu.memory_space<vmem>>, vector<16x128xf32>
    %5 = arith.subf %3, %4 : vector<16x128xf32>
    %6 = math.absf %5 : vector<16x128xf32>
    %c0_4 = arith.constant 0 : index
    %c0_5 = arith.constant 0 : index
    %7 = vector.load %arg4[%c0_4, %c0_5] : memref<8x128xf32, #tpu.memory_space<vmem>>, vector<8x128xf32>
    %8 = vector.shape_cast %6 : vector<16x128xf32> to vector<2x8x128xf32>
    %cst = arith.constant dense<0.000000e+00> : vector<8x128xf32>
    %9 = vector.multi_reduction <add>, %8, %cst [0] : vector<2x8x128xf32> to vector<8x128xf32>
    %10 = arith.addf %7, %9 : vector<8x128xf32>
    %c0_6 = arith.constant 0 : index
    %c0_7 = arith.constant 0 : index
    %11 = vector.load %arg4[%c0_6, %c0_7] : memref<8x128xf32, #tpu.memory_space<vmem>>, vector<8x128xf32>
    tpu.vector_store %arg4[%c0_6, %c0_7], %10 {strides = array<i32>} : memref<8x128xf32, #tpu.memory_space<vmem>>, vector<8x128xf32>,
    return
  }
  func.func @transform_0(%arg0: i32, %arg1: i32) -> (i32, i32) {
    %c1_i32 = arith.constant 1 : i32
    %0 = arith.muli %arg0, %c1_i32 : i32
    %1 = arith.addi %0, %arg1 : i32
    %c0_i32 = arith.constant 0 : i32
    %2 = arith.minsi %1, %c0_i32 : i32
    %c0_i32_0 = arith.constant 0 : i32
    %c0_i32_1 = arith.constant 0 : i32
    return %2, %c0_i32_0 : i32, i32
  }
  func.func @transform_1(%arg0: i32, %arg1: i32) -> (i32, i32) {
    %c1_i32 = arith.constant 1 : i32
    %0 = arith.muli %arg0, %c1_i32 : i32
    %1 = arith.addi %0, %arg1 : i32
    %c0_i32 = arith.constant 0 : i32
    %2 = arith.minsi %1, %c0_i32 : i32
    %c0_i32_0 = arith.constant 0 : i32
    %c0_i32_1 = arith.constant 0 : i32
    return %2, %c0_i32_0 : i32, i32
  }
  func.func @transform_2(%arg0: i32, %arg1: i32) -> (i32, i32) {
    %c0_i32 = arith.constant 0 : i32
    %c0_i32_0 = arith.constant 0 : i32
    return %arg0, %c0_i32 : i32, i32
  }
}

</mosaic_0001>

<llo_original>
// kernel: tpu_custom_call.1
$region0: #{tpu_custom_call.1}
  #allocation0 [shape = 'u32[]', space=smem, size = 0x4, offset = 0x4, fixed_abs, tag = 'smem constant byte address 0x4 - core index']
  #allocation1 [shape = 'u32[72,128]{1,0:T(1,128)}', space=vmem, size = 0x9000, scoped, tag = 'internal scratch']
  %s0 = inlined_call_operand.hbm [shape: f32[16,128], index: 0, kind: input, shape index: {}]
  %s1 = inlined_call_operand.hbm [shape: f32[16,128], index: 1, kind: input, shape index: {}]
  %s2 = inlined_call_operand.hbm [shape: f32[8,128], index: 2, kind: output, shape index: {}]
  %s3 = sld [smem:[#allocation0]]
  $region30: #{tpu_custom_call.1} parent=0
    _
  %s5 = ssub.s32 1, %s3
  %s6 = scalar_select 0, %s5, %s3
  $region1: #{tpu_custom_call.1} parent=0
    #allocation2 [shape = 'u8[8192]{0}', space=vmem, size = 0x2000, scoped, tag = 'input window, operand 0, single buffered']
    #allocation3 [shape = 's32[1]{0}', space=sflag, size = 0x4, scoped, tag = 'scoped memory for tpu_custom_call.1']
    #allocation4 [shape = 's32[1]{0}', space=sflag, size = 0x4, scoped, tag = 'scoped memory for tpu_custom_call.1']
    #allocation5 [shape = 'u8[8192]{0}', space=vmem, size = 0x2000, scoped, tag = 'input window, operand 1, single buffered']
    #allocation6 [shape = 's32[1]{0}', space=sflag, size = 0x4, scoped, tag = 'scoped memory for tpu_custom_call.1']
    #allocation7 [shape = 'u8[4096]{0}', space=vmem, size = 0x1000, scoped, tag = 'output window, operand 0, single buffered']
    %7 = vsyncpa [#allocation3], 0
    %8 = vsyncpa [#allocation6], 0
    %9 = vsyncpa [#allocation4], 0
    // Predicated region
    $region2: #{tpu_custom_call.1} parent=1 // pred_check
      _
    $region3: #{tpu_custom_call.1} parent=1 // pred_check_branch
      %11 = sbr.rel (0) target = $region5
    $region4: #{tpu_custom_call.1} parent=1 // pred_region
      %s12 = sadd.s32 0, 0
      %p13 = scmp.lt.s32.totalorder %s12, 0
      %s14 = scalar_select %p13, %s12, 0
      %s15 = smul.u32 2, %s14
      %17 = vsyncadd [#allocation3], 0
      %s18 = smul.addr %s15, 8
      %s19 = scalar_lea.hbm %s0, %s18
      %s20 = sshll.u32 %s19, 4
      %s21 = int_to_ptr.hbm [resolvable:$true] %s20
      %s22 = sshll.u32 [#allocation2], 4
      %s23 = int_to_ptr.vmem [resolvable:$true] %s22
      %28 = dma.hbm_to_vmem [thread:$0]  %s21, 256, %s23, [#allocation3], 128, 128, 8
    $region5: #{tpu_custom_call.1} parent=1 // pred_fallthru
      _
    // Predicated region
    $region6: #{tpu_custom_call.1} parent=1 // pred_check
      _
    $region7: #{tpu_custom_call.1} parent=1 // pred_check_branch
      %30 = sbr.rel (0) target = $region9
    $region8: #{tpu_custom_call.1} parent=1 // pred_region
      %s31 = sadd.s32 0, 0
      %p32 = scmp.lt.s32.totalorder %s31, 0
      %s33 = scalar_select %p32, %s31, 0
      %s34 = smul.u32 2, %s33
      %36 = vsyncadd [#allocation6], 0
      %s37 = smul.addr %s34, 8
      %s38 = scalar_lea.hbm %s1, %s37
      %s39 = sshll.u32 %s38, 4
      %s40 = int_to_ptr.hbm [resolvable:$true] %s39
      %s41 = sshll.u32 [#allocation5], 4
      %s42 = int_to_ptr.vmem [resolvable:$true] %s41
      %47 = dma.hbm_to_vmem [thread:$0]  %s40, 256, %s42, [#allocation6], 128, 128, 8
    $region9: #{tpu_custom_call.1} parent=1 // pred_fallthru
      _
    // Predicated region
    $region10: #{tpu_custom_call.1} parent=1 // pred_check
      _
    $region11: #{tpu_custom_call.1} parent=1 // pred_check_branch
      %49 = sbr.rel (0) target = $region13
    $region12: #{tpu_custom_call.1} parent=1 // pred_region
      %51 = dma.done [#allocation3], 256
    $region13: #{tpu_custom_call.1} parent=1 // pred_fallthru
      _
    // Predicated region
    $region14: #{tpu_custom_call.1} parent=1 // pred_check
      _
    $region15: #{tpu_custom_call.1} parent=1 // pred_check_branch
      %53 = sbr.rel (0) target = $region17
    $region16: #{tpu_custom_call.1} parent=1 // pred_region
      %55 = dma.done [#allocation6], 256
    $region17: #{tpu_custom_call.1} parent=1 // pred_fallthru
      _
    %s56 = sadd.s32 0, 0
    %p57 = scmp.lt.s32.totalorder %s56, 0
    %s58 = scalar_select %p57, %s56, 0
    %s59 = smul.u32 2, %s58
    %s60 = sadd.s32 0, 0
    %p61 = scmp.lt.s32.totalorder %s60, 0
    %s62 = scalar_select %p61, %s60, 0
    %s63 = smul.u32 2, %s62
    %p64 = scmp.eq.s32.totalorder 0, 0
    // Predicated region
    $region18: #{tpu_custom_call.1} parent=1 // pred_check
      %p65 = pneg %p64
    $region19: #{tpu_custom_call.1} parent=1 // pred_check_branch
      %67 = sbr.rel (%p65) target = $region21
    $region20: #{tpu_custom_call.1} parent=1 // pred_region
      %68 = vst [vmem:[#allocation7] sm:$0xff] 0.0
    $region21: #{tpu_custom_call.1} parent=1 // pred_fallthru
      _
    %v69 = vld [vmem:[#allocation2] sm:$0xff]
    %v70 = vld [vmem:[#allocation2 + $0x8] sm:$0xff]
    %v71 = vld [vmem:[#allocation5] sm:$0xff]
    %v72 = vld [vmem:[#allocation5 + $0x8] sm:$0xff]
    %v73 = vsub.f32 %v69, %v71
    %v74 = vsub.f32 %v70, %v72
    %v75 = vand.u32 2147483647, %v73
    %v76 = vand.u32 2147483647, %v74
    %v77 = vld [vmem:[#allocation7] sm:$0xff]
    %v78 = vadd.f32 %v75, %v76
    %v79 = vadd.f32 %v77, %v78
    %80 = vst [vmem:[#allocation7] sm:$0xff] %v79
    // Predicated region
    $region22: #{tpu_custom_call.1} parent=1 // pred_check
      _
    $region23: #{tpu_custom_call.1} parent=1 // pred_check_branch
      %82 = sbr.rel (0) target = $region25
    $region24: #{tpu_custom_call.1} parent=1 // pred_region
      %84 = vsyncadd [#allocation4], 0
      %s86 = sshll.u32 [#allocation7], 4
      %s87 = int_to_ptr.vmem [resolvable:$true] %s86
      %s88 = sshll.u32 %s2, 4
      %s89 = int_to_ptr.hbm [resolvable:$true] %s88
      %91 = dma.vmem_to_hbm [thread:$0]  %s87, 128, %s89, [#allocation4]
    $region25: #{tpu_custom_call.1} parent=1 // pred_fallthru
      _
    // Predicated region
    $region26: #{tpu_custom_call.1} parent=1 // pred_check
      _
    $region27: #{tpu_custom_call.1} parent=1 // pred_check_branch
      %93 = sbr.rel (0) target = $region29
    $region28: #{tpu_custom_call.1} parent=1 // pred_region
      %95 = dma.done [#allocation4], 128
    $region29: #{tpu_custom_call.1} parent=1 // pred_fallthru
      _
    %96 = vsyncpa [#allocation3], 1
    %97 = vsyncpa [#allocation6], 1
    %98 = vsyncpa [#allocation4], 1

</llo_original>
